<compile_context>
chip_gen: v7x
topology: tpu7x:2x2x1
jax: 0.10.0
libtpu: 0.0.40
codegen_flags: <defaults>
</compile_context>

<pallas_src>
import jax
import jax.numpy as jnp
from jax.experimental import pallas as pl
from jax.experimental.pallas import tpu as pltpu


# ----------------------------- kernel ---------------------------------------

def gprompt_kernel(x_ref, w_ref, o_ref):
    # [TM, TD] * [1, TD] -> [TM, TD]   (pure VPU work, broadcast over rows)
    o_ref[...] = x_ref[...] * w_ref[...]


# ----------------------------- wrapper ---------------------------------------

def _round_up(a: int, b: int) -> int:
    return ((a + b - 1) // b) * b


def gprompt_forward(x, weight, edge_index=None, edge_weight=None,
                    *, target_tile_bytes=2 << 20, max_full_d=2048):
    """GPrompt.forward: returns x * weight (weight broadcast over nodes).

    edge_index / edge_weight are unused (matches the reference module).
    """
    del edge_index, edge_weight  # unused by GPrompt.forward
    n, d = x.shape
    assert weight.shape == (1, d)

    itemsize = jnp.dtype(x.dtype).itemsize
    # Sublane packing multiple: 8 (f32), 16 (bf16), 32 (int8/fp8).
    sub = {4: 8, 2: 16, 1: 32}.get(itemsize, 8)

    # ---- column tiling -------------------------------------------------------
    # Common case: a single full-D column slab (block dim == full array dim is
    # always a legal block shape, even if D is not a multiple of 128).
    if d <= max_full_d:
        td = d
    else:
        td = max_full_d  # multiple of 128; partial edge block handled by Pallas

    # ---- row tiling ----------------------------------------------------------
    # Target ~2 MiB tiles: >=85%-of-roofline regime, and the double-buffered
    # footprint (2 x tile for x + 2 x tile for out + tiny weight) stays ~8 MiB,
    # within v5e's 16 MiB default scoped VMEM and well under v7x's 64 MiB.
    tm = _round_up(max(1, target_tile_bytes // (td * itemsize)), sub)
    if n >= 2 * sub:
        # Keep at least two row blocks so v7x's two TensorCores both get work.
        tm = min(tm, _round_up(pl.cdiv(n, 2), sub))
    if tm >= n:
        tm = n  # full-dim block (legal even if n is not a multiple of `sub`)

    cost = pl.CostEstimate(
        flops=n * d,
        transcendentals=0,
        bytes_accessed=(2 * n * d + d) * itemsize,
    )

    if td == d:
        # 1-D grid over rows; weight block index is constant -> fetched once.
        grid = (pl.cdiv(n, tm),)
        in_specs = [
            pl.BlockSpec((tm, d), lambda i: (i, 0)),
            pl.BlockSpec((1, d), lambda i: (0, 0)),
        ]
        out_specs = pl.BlockSpec((tm, d), lambda i: (i, 0))
        dims = ("parallel",)
    else:
        # Very wide features: column axis OUTER so the weight slab is only
        # re-fetched when the column block actually changes.
        grid = (pl.cdiv(d, td), pl.cdiv(n, tm))
        in_specs = [
            pl.BlockSpec((tm, td), lambda j, i: (i, j)),
            pl.BlockSpec((1, td), lambda j, i: (0, j)),
        ]
        out_specs = pl.BlockSpec((tm, td), lambda j, i: (i, j))
        dims = ("parallel", "parallel")

    return pl.pallas_call(
        gprompt_kernel,
        out_shape=jax.ShapeDtypeStruct((n, d), x.dtype),
        grid_spec=pltpu.PrefetchScalarGridSpec(
            num_scalar_prefetch=0,
            grid=grid,
            in_specs=in_specs,
            out_specs=out_specs,
        ),
        compiler_params=pltpu.CompilerParams(dimension_semantics=dims),
        cost_estimate=cost,
    )(x, weight)


# ------------------------------- main ----------------------------------------

if __name__ == "__main__":
    key = jax.random.PRNGKey(0)
    k_x, k_e, k_w, k_x2, k_w2 = jax.random.split(key, 5)

    # Small, lane-dense shapes consistent with the module.
    N, INPUT_DIM, OUTPUT_DIM, E = 512, 128, 32, 1024

    x = jax.random.normal(k_x, (N, INPUT_DIM), dtype=jnp.float32)
    edge_index = jax.random.randint(k_e, (2, E), 0, N, dtype=jnp.int32)

    # reset_parameters(): xavier_uniform_ on a (1, input_dim) tensor
    #   fan_in = input_dim, fan_out = 1  ->  bound = sqrt(6 / (fan_in + fan_out))
    bound = float(jnp.sqrt(6.0 / (INPUT_DIM + 1)))
    weight = jax.random.uniform(k_w, (1, INPUT_DIM), jnp.float32, -bound, bound)

    out = gprompt_forward(x, weight, edge_index)
    jax.block_until_ready(out)

    ref = x * weight
    assert out.shape == (N, INPUT_DIM)
    assert jnp.allclose(out, ref, rtol=1e-6, atol=1e-6)

    # Unaligned-shape check: exercises partial edge blocks (no pad / no slice).
    N2, D2 = 77, 100
    x2 = jax.random.normal(k_x2, (N2, D2), dtype=jnp.float32)
    w2 = jax.random.uniform(k_w2, (1, D2), jnp.float32, -bound, bound)
    out2 = gprompt_forward(x2, w2)
    jax.block_until_ready(out2)
    assert out2.shape == (N2, D2)
    assert jnp.allclose(out2, x2 * w2, rtol=1e-6, atol=1e-6)

    print("KERNEL_OK")
</pallas_src>

<mosaic_0001>
module attributes {stable_mosaic.version = 11 : i64} {
  func.func @gprompt_kernel(%arg0: i32, %arg1: memref<256x128xf32, #tpu.memory_space<vmem>>, %arg2: memref<1x128xf32, #tpu.memory_space<vmem>>, %arg3: memref<256x128xf32, #tpu.memory_space<vmem>>) attributes {dimension_semantics = [#tpu.dimension_semantics<parallel>], iteration_bounds = array<i64: 2>, scalar_prefetch = 0 : i64, scratch_operands = 0 : i64, tpu.core_type = #tpu.core_type<tc>, window_params = [{transform_indices = @transform_0, window_bounds = array<i64: 256, 128>}, {pipeline_mode = #tpu.pipeline_mode<synchronous>, transform_indices = @transform_1, window_bounds = array<i64: 1, 128>}, {transform_indices = @transform_2, window_bounds = array<i64: 256, 128>}]} {
    %c0 = arith.constant 0 : index
    %c0_0 = arith.constant 0 : index
    %0 = vector.load %arg1[%c0, %c0_0] : memref<256x128xf32, #tpu.memory_space<vmem>>, vector<256x128xf32>
    %c0_1 = arith.constant 0 : index
    %c0_2 = arith.constant 0 : index
    %1 = vector.load %arg2[%c0_1, %c0_2] : memref<1x128xf32, #tpu.memory_space<vmem>>, vector<1x128xf32>
    %2 = vector.broadcast %1 : vector<1x128xf32> to vector<256x128xf32>
    %3 = arith.mulf %0, %2 : vector<256x128xf32>
    %c0_3 = arith.constant 0 : index
    %c0_4 = arith.constant 0 : index
    %4 = vector.load %arg3[%c0_3, %c0_4] : memref<256x128xf32, #tpu.memory_space<vmem>>, vector<256x128xf32>
    tpu.vector_store %arg3[%c0_3, %c0_4], %3 {strides = array<i32>} : memref<256x128xf32, #tpu.memory_space<vmem>>, vector<256x128xf32>,
    return
  }
  func.func @transform_0(%arg0: i32) -> (i32, i32) {
    %c0_i32 = arith.constant 0 : i32
    %c0_i32_0 = arith.constant 0 : i32
    return %arg0, %c0_i32 : i32, i32
  }
  func.func @transform_1(%arg0: i32) -> (i32, i32) {
    %c0_i32 = arith.constant 0 : i32
    %c0_i32_0 = arith.constant 0 : i32
    %c0_i32_1 = arith.constant 0 : i32
    return %c0_i32, %c0_i32_0 : i32, i32
  }
  func.func @transform_2(%arg0: i32) -> (i32, i32) {
    %c0_i32 = arith.constant 0 : i32
    %c0_i32_0 = arith.constant 0 : i32
    return %arg0, %c0_i32 : i32, i32
  }
}

</mosaic_0001>

<llo_original>
// kernel: tpu_custom_call.1
$region0: #{tpu_custom_call.1}
  #allocation0 [shape = 'u32[]', space=smem, size = 0x4, offset = 0x4, fixed_abs, tag = 'smem constant byte address 0x4 - core index']
  #allocation1 [shape = 'u32[144,128]{1,0:T(1,128)}', space=vmem, size = 0x12000, scoped, tag = 'internal scratch']
  %s0 = inlined_call_operand.hbm [shape: f32[512,128], index: 0, kind: input, shape index: {}]
  %s1 = inlined_call_operand.vmem [shape: f32[1,128], index: 1, kind: input, shape index: {}]
  %s2 = inlined_call_operand.hbm [shape: f32[512,128], index: 2, kind: output, shape index: {}]
  %s3 = sld [smem:[#allocation0]]
  $region45: #{tpu_custom_call.1} parent=0
    _
  %s5 = ssub.s32 1, %s3
  %s6 = scalar_select 0, %s5, %s3
  $region1: #{tpu_custom_call.1} parent=0
    #allocation2 [shape = 'u8[262144]{0}', space=vmem, size = 0x40000, scoped, tag = 'input window, operand 0']
    #allocation3 [shape = 's32[2]{0}', space=sflag, size = 0x8, scoped, tag = 'scoped memory for tpu_custom_call.1']
    #allocation4 [shape = 's32[2]{0}', space=sflag, size = 0x8, scoped, tag = 'scoped memory for tpu_custom_call.1']
    #allocation5 [shape = 'u8[262144]{0}', space=vmem, size = 0x40000, scoped, tag = 'output window, operand 0']
    %7 = vsyncpa [#allocation3], 0
    %s8 = scalar_lea.sflag [#allocation3], 1
    %9 = vsyncpa %s8, 0
    %10 = vsyncpa [#allocation4], 0
    %s11 = scalar_lea.sflag [#allocation4], 1
    %12 = vsyncpa %s11, 0
    loop: start=0, step=1, limit=4
    $region2: #{tpu_custom_call.1} parent=1 // loop_pre_header
      _
    $region3: #{tpu_custom_call.1} parent=1 // loop_header
      %s14 = sphi 0, %s18
      %p15 = scmp.ge.s32.totalorder %s14, 4
      %s24 = sphi 0, %s26
      %s27 = sphi 0, %s24
      %s28 = sphi 0, %s27
      %s44 = sphi 0, %s28
      %s48 = sphi 0, %s48
      %s50 = sphi 0, %s48
      %s51 = sphi 0, %s50
      %s65 = sphi 0, %s51
      %s71 = sphi 0, %s73
      %s74 = sphi 0, %s71
      %s75 = sphi 0, %s74
      %s91 = sphi 0, %s75
    $region4: #{tpu_custom_call.1} parent=1 // loop_header_branch
      %17 = sbr.rel (%p15) target = $region8
    $region5: #{tpu_custom_call.1} parent=1 // loop_body
      %s19 = ssub.s32 %s14, 1
      %s20 = ssub.s32 %s14, 2
      %s21 = sadd.s32 %s14, 1
      %s22 = ssub.s32 %s14, %s21
      %p23 = scmp.eq.s32.totalorder %s22, 0
      %s25 = sadd.s32 %s24, 1
      %s26 = scalar_select %p23, %s24, %s25
      %p29 = pneg %p23
      %p30 = scmp.eq.s32.totalorder %s14, 1
      %p31 = por %p29, %p30
      %p32 = scmp.ne.s32.totalorder %s24, %s27
      %p33 = scmp.eq.s32.totalorder %s14, 0
      %p34 = por %p32, %p33
      %p35 = scmp.ne.s32.totalorder %s24, %s27
      %p36 = scmp.eq.s32.totalorder %s19, 1
      %p37 = por %p35, %p36
      %p38 = scmp.ne.s32.totalorder %s27, %s28
      %p39 = scmp.eq.s32.totalorder %s19, 0
      %p40 = por %p38, %p39
      %p41 = scmp.ne.s32.totalorder %s27, %s28
      %p42 = scmp.eq.s32.totalorder %s20, 1
      %p43 = por %p41, %p42
      %p45 = scmp.ne.s32.totalorder %s28, %s44
      %p46 = scmp.eq.s32.totalorder %s20, 0
      %p47 = por %p45, %p46
      %s49 = sadd.s32 %s48, 1
      %p52 = scmp.eq.s32.totalorder %s14, 1
      %p53 = scmp.ne.s32.totalorder %s48, %s50
      %p54 = scmp.eq.s32.totalorder %s14, 0
      %p55 = por %p53, %p54
      %p56 = scmp.ne.s32.totalorder %s48, %s50
      %p57 = scmp.eq.s32.totalorder %s19, 1
      %p58 = por %p56, %p57
      %p59 = scmp.ne.s32.totalorder %s50, %s51
      %p60 = scmp.eq.s32.totalorder %s19, 0
      %p61 = por %p59, %p60
      %p62 = scmp.ne.s32.totalorder %s50, %s51
      %p63 = scmp.eq.s32.totalorder %s20, 1
      %p64 = por %p62, %p63
      %p66 = scmp.ne.s32.totalorder %s51, %s65
      %p67 = scmp.eq.s32.totalorder %s20, 0
      %p68 = por %p66, %p67
      %s69 = ssub.s32 %s14, %s21
      %p70 = scmp.eq.s32.totalorder %s69, 0
      %s72 = sadd.s32 %s71, 1
      %s73 = scalar_select %p70, %s71, %s72
      %p76 = pneg %p70
      %p77 = scmp.eq.s32.totalorder %s14, 1
      %p78 = por %p76, %p77
      %p79 = scmp.ne.s32.totalorder %s71, %s74
      %p80 = scmp.eq.s32.totalorder %s14, 0
      %p81 = por %p79, %p80
      %p82 = scmp.ne.s32.totalorder %s71, %s74
      %p83 = scmp.eq.s32.totalorder %s19, 1
      %p84 = por %p82, %p83
      %p85 = scmp.ne.s32.totalorder %s74, %s75
      %p86 = scmp.eq.s32.totalorder %s19, 0
      %p87 = por %p85, %p86
      %p88 = scmp.ne.s32.totalorder %s74, %s75
      %p89 = scmp.eq.s32.totalorder %s20, 1
      %p90 = por %p88, %p89
      %p92 = scmp.ne.s32.totalorder %s75, %s91
      %p93 = scmp.eq.s32.totalorder %s20, 0
      %p94 = por %p92, %p93
      %p95 = scmp.le.s32.totalorder 1, %s14
      %p96 = scmp.lt.s32.totalorder %s14, 3
      %p97 = pnand %p95, %p96
      %p98 = pneg %p97
      // Predicated region
      $region9: #{tpu_custom_call.1} parent=5 // pred_check
        _
      $region10: #{tpu_custom_call.1} parent=5 // pred_check_branch
        %100 = sbr.rel (%p97) target = $region12
      $region11: #{tpu_custom_call.1} parent=5 // pred_region
        %s101 = ssub.s32 %s14, 1
        // Predicated region
        $region13: #{tpu_custom_call.1} parent=11 // pred_check
          %p102 = pneg %p61
        $region14: #{tpu_custom_call.1} parent=11 // pred_check_branch
          %104 = sbr.rel (%p102) target = $region16
        $region15: #{tpu_custom_call.1} parent=11 // pred_region
          _
        $region16: #{tpu_custom_call.1} parent=11 // pred_fallthru
          _
      $region12: #{tpu_custom_call.1} parent=5 // pred_fallthru
        _
      %p105 = scmp.lt.s32.totalorder %s14, 2
      // Predicated region
      $region17: #{tpu_custom_call.1} parent=5 // pred_check
        %p106 = pneg %p105
      $region18: #{tpu_custom_call.1} parent=5 // pred_check_branch
        %108 = sbr.rel (%p106) target = $region20
      $region19: #{tpu_custom_call.1} parent=5 // pred_region
        // Predicated region
        $region21: #{tpu_custom_call.1} parent=19 // pred_check
          %p109 = pneg %p34
        $region22: #{tpu_custom_call.1} parent=19 // pred_check_branch
          %111 = sbr.rel (%p109) target = $region24
        $region23: #{tpu_custom_call.1} parent=19 // pred_region
          %s112 = sand.u32 %s24, 1
          %s113 = scalar_lea.sflag [#allocation3], %s112
          %s114 = sand.u32 %s24, 1
          %s115 = smul.addr %s114, 256
          %s116 = scalar_lea.vmem [#allocation2], %s115
          %s117 = smul.u32 32, %s14
          %s119 = ssub.s32 4096, 4096
          %120 = vsyncadd %s113, %s119
          %s121 = smul.addr %s117, 128
          %s122 = scalar_lea.hbm %s0, %s121
          %s123 = sshll.u32 %s116, 4
          %s124 = int_to_ptr.vmem [resolvable:$true] %s123
          %129 = dma.hbm_to_vmem [thread:$0]  %s122, 4096, %s124, %s113, 128, 128, 8
        $region24: #{tpu_custom_call.1} parent=19 // pred_fallthru
          _
      $region20: #{tpu_custom_call.1} parent=5 // pred_fallthru
        _
      %p130 = scmp.le.s32.totalorder 1, %s14
      %p131 = scmp.lt.s32.totalorder %s14, 3
      %p132 = pnand %p130, %p131
      %p133 = pneg %p132
      // Predicated region
      $region25: #{tpu_custom_call.1} parent=5 // pred_check
        _
      $region26: #{tpu_custom_call.1} parent=5 // pred_check_branch
        %135 = sbr.rel (%p132) target = $region28
      $region27: #{tpu_custom_call.1} parent=5 // pred_region
        %s136 = ssub.s32 %s14, 1
        %s137 = sand.u32 %s27, 1
        %s138 = scalar_lea.sflag [#allocation3], %s137
        %s139 = sand.u32 %s27, 1
        %s140 = smul.addr %s139, 256
        %s141 = scalar_lea.vmem [#allocation2], %s140
        // Predicated region
        $region29: #{tpu_custom_call.1} parent=27 // pred_check
          %p142 = pneg %p40
        $region30: #{tpu_custom_call.1} parent=27 // pred_check_branch
          %144 = sbr.rel (%p142) target = $region32
        $region31: #{tpu_custom_call.1} parent=27 // pred_region
          %145 = dma.done %s138, 4096
        $region32: #{tpu_custom_call.1} parent=27 // pred_fallthru
          _
        %s146 = sand.u32 %s27, 1
        %s147 = scalar_lea.sflag [#allocation3], %s146
        %s148 = sand.u32 %s27, 1
        %s149 = smul.addr %s148, 256
        %s150 = scalar_lea.vmem [#allocation2], %s149
        %p151 = pneg %p40
        %p152 = pneg %p37
        %p153 = pneg %p61
        %p154 = pneg %p58
        %p155 = pneg %p87
        %p156 = pneg %p84
        %s157 = sand.u32 %s74, 1
        %s158 = scalar_lea.sflag [#allocation4], %s157
        %s159 = sand.u32 %s74, 1
        %s160 = smul.addr %s159, 256
        %s161 = scalar_lea.vmem [#allocation5], %s160
        %s162 = smul.u32 32, %s19
        %s163 = smul.u32 32, %s19
        %v164 = vld [vmem:[%s141] sm:$0xff]
        %v165 = vld [vmem:[%s141 + $0x8] sm:$0xff]
        %v166 = vld [vmem:[%s141 + $0x10] sm:$0xff]
        %v167 = vld [vmem:[%s141 + $0x18] sm:$0xff]
        %v168 = vld [vmem:[%s141 + $0x20] sm:$0xff]
        %v169 = vld [vmem:[%s141 + $0x28] sm:$0xff]
        %v170 = vld [vmem:[%s141 + $0x30] sm:$0xff]
        %v171 = vld [vmem:[%s141 + $0x38] sm:$0xff]
        %v172 = vld [vmem:[%s141 + $0x40] sm:$0xff]
        %v173 = vld [vmem:[%s141 + $0x48] sm:$0xff]
        %v174 = vld [vmem:[%s141 + $0x50] sm:$0xff]
        %v175 = vld [vmem:[%s141 + $0x58] sm:$0xff]
        %v176 = vld [vmem:[%s141 + $0x60] sm:$0xff]
        %v177 = vld [vmem:[%s141 + $0x68] sm:$0xff]
        %v178 = vld [vmem:[%s141 + $0x70] sm:$0xff]
        %v179 = vld [vmem:[%s141 + $0x78] sm:$0xff]
        %v180 = vld [vmem:[%s141 + $0x80] sm:$0xff]
        %v181 = vld [vmem:[%s141 + $0x88] sm:$0xff]
        %v182 = vld [vmem:[%s141 + $0x90] sm:$0xff]
        %v183 = vld [vmem:[%s141 + $0x98] sm:$0xff]
        %v184 = vld [vmem:[%s141 + $0xa0] sm:$0xff]
        %v185 = vld [vmem:[%s141 + $0xa8] sm:$0xff]
        %v186 = vld [vmem:[%s141 + $0xb0] sm:$0xff]
        %v187 = vld [vmem:[%s141 + $0xb8] sm:$0xff]
        %v188 = vld [vmem:[%s141 + $0xc0] sm:$0xff]
        %v189 = vld [vmem:[%s141 + $0xc8] sm:$0xff]
        %v190 = vld [vmem:[%s141 + $0xd0] sm:$0xff]
        %v191 = vld [vmem:[%s141 + $0xd8] sm:$0xff]
        %v192 = vld [vmem:[%s141 + $0xe0] sm:$0xff]
        %v193 = vld [vmem:[%s141 + $0xe8] sm:$0xff]
        %v194 = vld [vmem:[%s141 + $0xf0] sm:$0xff]
        %v195 = vld [vmem:[%s141 + $0xf8] sm:$0xff]
        %v196 = vld [vmem:[%s1] sm:$0x1]
        %v198 = vlaneseq
        %v199 = vshrl.u32 %v198, 7
        %v200 = vsub.s32 0, %v199
        %v201 = vrot.slane %v196, %v200
        %v203 = vmul.f32 %v164, %v201
        %v204 = vmul.f32 %v165, %v201
        %v205 = vmul.f32 %v166, %v201
        %v206 = vmul.f32 %v167, %v201
        %v207 = vmul.f32 %v168, %v201
        %v208 = vmul.f32 %v169, %v201
        %v209 = vmul.f32 %v170, %v201
        %v210 = vmul.f32 %v171, %v201
        %v211 = vmul.f32 %v172, %v201
        %v212 = vmul.f32 %v173, %v201
        %v213 = vmul.f32 %v174, %v201
        %v214 = vmul.f32 %v175, %v201
        %v215 = vmul.f32 %v176, %v201
        %v216 = vmul.f32 %v177, %v201
        %v217 = vmul.f32 %v178, %v201
        %v218 = vmul.f32 %v179, %v201
        %v219 = vmul.f32 %v180, %v201
        %v220 = vmul.f32 %v181, %v201
        %v221 = vmul.f32 %v182, %v201
        %v222 = vmul.f32 %v183, %v201
        %v223 = vmul.f32 %v184, %v201
        %v224 = vmul.f32 %v185, %v201
        %v225 = vmul.f32 %v186, %v201
        %v226 = vmul.f32 %v187, %v201
        %v227 = vmul.f32 %v188, %v201
        %v228 = vmul.f32 %v189, %v201
        %v229 = vmul.f32 %v190, %v201
        %v230 = vmul.f32 %v191, %v201
        %v231 = vmul.f32 %v192, %v201
        %v232 = vmul.f32 %v193, %v201
        %v233 = vmul.f32 %v194, %v201
        %v234 = vmul.f32 %v195, %v201
        %235 = vst [vmem:[%s161] sm:$0xff] %v203
        %236 = vst [vmem:[%s161 + $0x8] sm:$0xff] %v204
        %237 = vst [vmem:[%s161 + $0x10] sm:$0xff] %v205
        %238 = vst [vmem:[%s161 + $0x18] sm:$0xff] %v206
        %239 = vst [vmem:[%s161 + $0x20] sm:$0xff] %v207
        %240 = vst [vmem:[%s161 + $0x28] sm:$0xff] %v208
        %241 = vst [vmem:[%s161 + $0x30] sm:$0xff] %v209
        %242 = vst [vmem:[%s161 + $0x38] sm:$0xff] %v210
        %243 = vst [vmem:[%s161 + $0x40] sm:$0xff] %v211
        %244 = vst [vmem:[%s161 + $0x48] sm:$0xff] %v212
        %245 = vst [vmem:[%s161 + $0x50] sm:$0xff] %v213
        %246 = vst [vmem:[%s161 + $0x58] sm:$0xff] %v214
        %247 = vst [vmem:[%s161 + $0x60] sm:$0xff] %v215
        %248 = vst [vmem:[%s161 + $0x68] sm:$0xff] %v216
        %249 = vst [vmem:[%s161 + $0x70] sm:$0xff] %v217
        %250 = vst [vmem:[%s161 + $0x78] sm:$0xff] %v218
        %251 = vst [vmem:[%s161 + $0x80] sm:$0xff] %v219
        %252 = vst [vmem:[%s161 + $0x88] sm:$0xff] %v220
        %253 = vst [vmem:[%s161 + $0x90] sm:$0xff] %v221
        %254 = vst [vmem:[%s161 + $0x98] sm:$0xff] %v222
        %255 = vst [vmem:[%s161 + $0xa0] sm:$0xff] %v223
        %256 = vst [vmem:[%s161 + $0xa8] sm:$0xff] %v224
        %257 = vst [vmem:[%s161 + $0xb0] sm:$0xff] %v225
        %258 = vst [vmem:[%s161 + $0xb8] sm:$0xff] %v226
        %259 = vst [vmem:[%s161 + $0xc0] sm:$0xff] %v227
        %260 = vst [vmem:[%s161 + $0xc8] sm:$0xff] %v228
        %261 = vst [vmem:[%s161 + $0xd0] sm:$0xff] %v229
        %262 = vst [vmem:[%s161 + $0xd8] sm:$0xff] %v230
        %263 = vst [vmem:[%s161 + $0xe0] sm:$0xff] %v231
        %264 = vst [vmem:[%s161 + $0xe8] sm:$0xff] %v232
        %265 = vst [vmem:[%s161 + $0xf0] sm:$0xff] %v233
        %266 = vst [vmem:[%s161 + $0xf8] sm:$0xff] %v234
        %s267 = sand.u32 %s74, 1
        %s268 = scalar_lea.sflag [#allocation4], %s267
        %s269 = sand.u32 %s74, 1
        %s270 = smul.addr %s269, 256
        %s271 = scalar_lea.vmem [#allocation5], %s270
        // Predicated region
        $region33: #{tpu_custom_call.1} parent=27 // pred_check
          %p272 = pneg %p84
        $region34: #{tpu_custom_call.1} parent=27 // pred_check_branch
          %274 = sbr.rel (%p272) target = $region36
        $region35: #{tpu_custom_call.1} parent=27 // pred_region
          %s275 = smul.u32 32, %s19
          %s277 = ssub.s32 4096, 4096
          %278 = vsyncadd %s268, %s277
          %s279 = smul.addr %s275, 128
          %s280 = scalar_lea.hbm %s2, %s279
          %s281 = sshll.u32 %s271, 4
          %s282 = int_to_ptr.vmem [resolvable:$true] %s281
          %287 = dma.vmem_to_hbm [thread:$0]  %s282, 4096, %s280, %s268, 128, 128, 8
        $region36: #{tpu_custom_call.1} parent=27 // pred_fallthru
          _
      $region28: #{tpu_custom_call.1} parent=5 // pred_fallthru
        _
      %p288 = scmp.le.s32.totalorder 2, %s14
      // Predicated region
      $region37: #{tpu_custom_call.1} parent=5 // pred_check
        %p289 = pneg %p288
      $region38: #{tpu_custom_call.1} parent=5 // pred_check_branch
        %291 = sbr.rel (%p289) target = $region40
      $region39: #{tpu_custom_call.1} parent=5 // pred_region
        %s292 = ssub.s32 %s14, 2
        // Predicated region
        $region41: #{tpu_custom_call.1} parent=39 // pred_check
          %p293 = pneg %p90
        $region42: #{tpu_custom_call.1} parent=39 // pred_check_branch
          %295 = sbr.rel (%p293) target = $region44
        $region43: #{tpu_custom_call.1} parent=39 // pred_region
          %s296 = sand.u32 %s75, 1
          %s297 = scalar_lea.sflag [#allocation4], %s296
          %s298 = sand.u32 %s75, 1
          %s299 = smul.addr %s298, 256
          %s300 = scalar_lea.vmem [#allocation5], %s299
          %301 = dma.done %s297, 4096
        $region44: #{tpu_custom_call.1} parent=39 // pred_fallthru
          _
      $region40: #{tpu_custom_call.1} parent=5 // pred_fallthru
        _
    $region6: #{tpu_custom_call.1} parent=1 // loop_footer
      %s18 = sadd.s32 1, %s14
    $region7: #{tpu_custom_call.1} parent=1 // loop_footer_branch
      %13 = sbr.rel target = $region3
    $region8: #{tpu_custom_call.1} parent=1 // loop_exit
      _
    %302 = vsyncpa [#allocation3], 1
    %s303 = scalar_lea.sflag [#allocation3], 1
    %304 = vsyncpa %s303, 1
    %305 = vsyncpa [#allocation4], 1
    %s306 = scalar_lea.sflag [#allocation4], 1
    %307 = vsyncpa %s306, 1

</llo_original>
